<compile_context>
chip_gen: v5e
topology: v5e:2x2
jax: 0.10.0
libtpu: 0.0.40
codegen_flags: <defaults>
</compile_context>

<pallas_src>
import jax
import jax.numpy as jnp
from jax.experimental import pallas as pl
from jax.experimental.pallas import tpu as pltpu


def _sigmoid(z):
    # tanh form of the logistic: a single EUP op per element instead of an
    # exp + reciprocal chain.
    return 0.5 * jnp.tanh(0.5 * z) + 0.5


def make_effa_kernel(C, HW, k):
    pad = (k - 1) // 2
    inv_hw = 1.0 / float(HW)  # Python float -> staged as a literal, never a captured const

    def kernel(x_ref, edge_ref, w_ref, b_ref, out_ref, e_ref):
        rblk = x_ref.shape[0]  # rows per block (= bblk * C)

        # ---- pass 1: e = sigmoid(edge*x + edge) (kept in VMEM scratch) and GAP --
        x = x_ref[...].astype(jnp.float32)        # (rblk, HW)
        edge = edge_ref[...].astype(jnp.float32)  # (rblk, HW)
        e = _sigmoid(edge * x + edge)
        e_ref[...] = e
        xs = e + x
        y = jnp.sum(xs, axis=1, keepdims=True) * inv_hw        # (rblk, 1)

        # ---- tiny Conv1d over the channel axis: shifted adds + edge masks ------
        # Blocks hold whole batches, so row r has channel index r % C.  Taps
        # falling outside [0, C) are zeroed to match Conv1d zero padding, and
        # taps therefore never cross a batch boundary.
        ch = jax.lax.broadcasted_iota(jnp.int32, (rblk, 1), 0) % C
        yc = w_ref[pad] * y                                     # center tap
        for t in range(k):
            off = t - pad                    # contribution y[row + off]
            if off == 0:
                continue
            shifted = pltpu.roll(y, shift=(-off) % rblk, axis=0)
            valid = (ch + off >= 0) & (ch + off < C)
            yc = yc + w_ref[t] * jnp.where(valid, shifted, 0.0)
        a = _sigmoid(yc + b_ref[0])                             # (rblk, 1)

        # ---- pass 2: out = (e + x) * a + e (e read back from VMEM scratch) ----
        x2 = x_ref[...].astype(jnp.float32)
        e2 = e_ref[...]
        out_ref[...] = ((e2 + x2) * a + e2).astype(out_ref.dtype)

    return kernel


def _pick_batch_block(B, C, HW, itemsize, target_bytes=4 << 20):
    """#batches per grid step: sublane-legal blocks of a few MiB, >=2 steps if possible."""
    row_bytes = HW * itemsize
    candidates = [bb for bb in range(1, B + 1)
                  if B % bb == 0 and ((bb * C) % 8 == 0 or bb == B)]
    fitting = [bb for bb in candidates if bb * C * row_bytes <= target_bytes]
    # Prefer at least 2 grid steps so v7x's 2 TensorCores both get work.
    multi = [bb for bb in fitting if (B // bb) >= 2]
    if multi:
        return max(multi)
    if fitting:
        return max(fitting)
    # TODO(synk): add a lane-axis (spatial) split with a two-pass GAP for the
    # case where even a single batch's rows exceed the VMEM budget.
    return min(candidates)


def effa_pallas(x, edge, conv_w, conv_b):
    """x, edge: (B, C, H, W) in f32 or bf16 (NCHW, matching the PyTorch module)."""
    B, C, H, W = x.shape
    HW = H * W
    k = int(conv_w.shape[0])
    BC = B * C

    itemsize = jnp.dtype(x.dtype).itemsize
    bblk = _pick_batch_block(B, C, HW, itemsize)
    rblk = bblk * C                          # rows per block (whole batches)

    # No padding, no post-slice: block last dim == full array dim is legal
    # even when HW % 128 != 0.
    xf = x.reshape(BC, HW)
    ef = edge.reshape(BC, HW).astype(x.dtype)

    w = conv_w.astype(jnp.float32).reshape(k)
    b = conv_b.astype(jnp.float32).reshape(1)

    # Scoped VMEM: 3 streams x 2 buffers of the I/O block + the f32 e-scratch,
    # capped at 48 MiB so it never exceeds v7x's 64 MiB physical VMEM.
    block_io_bytes = rblk * HW * itemsize
    scratch_bytes = rblk * HW * 4
    needed = 6 * block_io_bytes + scratch_bytes + (2 << 20)
    vmem_limit = int(min(48 << 20, max(32 << 20, needed)))

    out = pl.pallas_call(
        make_effa_kernel(C, HW, k),
        out_shape=jax.ShapeDtypeStruct((BC, HW), x.dtype),
        grid_spec=pltpu.PrefetchScalarGridSpec(
            num_scalar_prefetch=0,
            grid=(BC // rblk,),
            in_specs=[
                pl.BlockSpec((rblk, HW), lambda r: (r, 0)),
                pl.BlockSpec((rblk, HW), lambda r: (r, 0)),
                pl.BlockSpec(memory_space=pltpu.MemorySpace.SMEM),  # conv_w (k,)
                pl.BlockSpec(memory_space=pltpu.MemorySpace.SMEM),  # conv_b (1,)
            ],
            out_specs=pl.BlockSpec((rblk, HW), lambda r: (r, 0)),
            scratch_shapes=[pltpu.VMEM((rblk, HW), jnp.float32)],   # e buffer
        ),
        compiler_params=pltpu.CompilerParams(
            dimension_semantics=("parallel",),
            vmem_limit_bytes=vmem_limit,
        ),
    )(xf, ef, w, b)

    return out.reshape(B, C, H, W)


def effa_ref(x, edge, conv_w, conv_b):
    """Pure-JAX reference mirroring the PyTorch forward."""
    e = jax.nn.sigmoid(edge * x + edge)
    xs = e + x
    y = jnp.mean(xs, axis=(2, 3))  # (B, C)
    pad = (conv_w.shape[0] - 1) // 2
    yp = jnp.pad(y, ((0, 0), (pad, pad)))
    yc = sum(conv_w[t] * yp[:, t:t + y.shape[1]] for t in range(conv_w.shape[0]))
    yc = yc + conv_b[0]
    a = jax.nn.sigmoid(yc)[:, :, None, None]
    return xs * a + e


if __name__ == "__main__":
    key = jax.random.PRNGKey(0)
    kx, ke, kw, kb = jax.random.split(key, 4)
    B, C, H, W = 2, 4, 16, 16

    x = jax.random.normal(kx, (B, C, H, W), dtype=jnp.float32)
    edge = jax.random.normal(ke, (B, C, H, W), dtype=jnp.float32)

    # Conv1d(in=1, out=1, kernel_size=3, padding=1) parameters, deterministic.
    conv_w = jax.random.normal(kw, (3,), dtype=jnp.float32) * 0.5
    conv_b = jax.random.normal(kb, (1,), dtype=jnp.float32) * 0.1

    ref = effa_ref(x, edge, conv_w, conv_b)

    out = jax.block_until_ready(effa_pallas(x, edge, conv_w, conv_b))
    assert out.shape == (B, C, H, W)
    assert jnp.allclose(out, ref, atol=1e-5, rtol=1e-5), "Pallas output mismatch vs reference"
    print("KERNEL_OK")
</pallas_src>

<mosaic_0001>
module attributes {stable_mosaic.version = 11 : i64} {
  func.func @kernel(%arg0: i32, %arg1: memref<8x256xf32, #tpu.memory_space<vmem>>, %arg2: memref<8x256xf32, #tpu.memory_space<vmem>>, %arg3: memref<3xf32, #tpu.memory_space<smem>>, %arg4: memref<1xf32, #tpu.memory_space<smem>>, %arg5: memref<8x256xf32, #tpu.memory_space<vmem>>, %arg6: memref<8x256xf32, #tpu.memory_space<vmem>>) attributes {dimension_semantics = [#tpu.dimension_semantics<parallel>], iteration_bounds = array<i64: 1>, scalar_prefetch = 0 : i64, scratch_operands = 1 : i64, tpu.core_type = #tpu.core_type<tc>, window_params = [{transform_indices = @transform_0, window_bounds = array<i64: 8, 256>}, {transform_indices = @transform_1, window_bounds = array<i64: 8, 256>}, {transform_indices = @transform_2, window_bounds = array<i64: 3>}, {transform_indices = @transform_3, window_bounds = array<i64: 1>}, {transform_indices = @transform_4, window_bounds = array<i64: 8, 256>}]} {
    %c0 = arith.constant 0 : index
    %c0_0 = arith.constant 0 : index
    %0 = vector.load %arg1[%c0, %c0_0] : memref<8x256xf32, #tpu.memory_space<vmem>>, vector<8x256xf32>
    %c0_1 = arith.constant 0 : index
    %c0_2 = arith.constant 0 : index
    %1 = vector.load %arg2[%c0_1, %c0_2] : memref<8x256xf32, #tpu.memory_space<vmem>>, vector<8x256xf32>
    %2 = arith.mulf %1, %0 : vector<8x256xf32>
    %3 = arith.addf %2, %1 : vector<8x256xf32>
    %cst = arith.constant 5.000000e-01 : f32
    %4 = vector.broadcast %cst : f32 to vector<8x256xf32>
    %5 = arith.mulf %4, %3 : vector<8x256xf32>
    %6 = math.tanh %5 : vector<8x256xf32>
    %cst_3 = arith.constant 5.000000e-01 : f32
    %7 = vector.broadcast %cst_3 : f32 to vector<8x256xf32>
    %8 = arith.mulf %7, %6 : vector<8x256xf32>
    %cst_4 = arith.constant 5.000000e-01 : f32
    %9 = vector.broadcast %cst_4 : f32 to vector<8x256xf32>
    %10 = arith.addf %8, %9 : vector<8x256xf32>
    %c0_5 = arith.constant 0 : index
    %c0_6 = arith.constant 0 : index
    %11 = vector.load %arg6[%c0_5, %c0_6] : memref<8x256xf32, #tpu.memory_space<vmem>>, vector<8x256xf32>
    tpu.vector_store %arg6[%c0_5, %c0_6], %10 {strides = array<i32>} : memref<8x256xf32, #tpu.memory_space<vmem>>, vector<8x256xf32>,
    %12 = arith.addf %10, %0 : vector<8x256xf32>
    %cst_7 = arith.constant dense<0.000000e+00> : vector<8xf32>
    %13 = vector.multi_reduction <add>, %12, %cst_7 [1] : vector<8x256xf32> to vector<8xf32>
    %14 = vector.shape_cast %13 : vector<8xf32> to vector<8x1xf32>
    %cst_8 = arith.constant 3.906250e-03 : f32
    %15 = vector.broadcast %cst_8 : f32 to vector<8x1xf32>
    %16 = arith.mulf %14, %15 : vector<8x1xf32>
    %17 = tpu.iota {dimensions = array<i32: 0>} : vector<8x1xi32>
    %c4_i32 = arith.constant 4 : i32
    %c0_i32 = arith.constant 0 : i32
    %18 = arith.cmpi eq, %c4_i32, %c0_i32 : i32
    %c1_i32 = arith.constant 1 : i32
    %19 = arith.select %18, %c1_i32, %c4_i32 : i32
    %20 = vector.broadcast %19 : i32 to vector<8x1xi32>
    %21 = arith.remsi %17, %20 : vector<8x1xi32>
    %c0_i32_9 = arith.constant 0 : i32
    %22 = vector.broadcast %c0_i32_9 : i32 to vector<8x1xi32>
    %23 = arith.cmpi ne, %21, %22 : vector<8x1xi32>
    %c0_i32_10 = arith.constant 0 : i32
    %24 = vector.broadcast %c0_i32_10 : i32 to vector<8x1xi32>
    %25 = arith.cmpi slt, %21, %24 : vector<8x1xi32>
    %c0_i32_11 = arith.constant 0 : i32
    %26 = arith.cmpi slt, %19, %c0_i32_11 : i32
    %27 = vector.broadcast %26 : i1 to vector<8x1xi1>
    %28 = vector.broadcast %27 : vector<8x1xi1> to vector<8x1xi1>
    %29 = arith.xori %25, %28 : vector<8x1xi1>
    %30 = arith.andi %29, %23 : vector<8x1xi1>
    %31 = vector.broadcast %19 : i32 to vector<8x1xi32>
    %32 = arith.addi %21, %31 : vector<8x1xi32>
    %33 = arith.select %30, %32, %21 : vector<8x1xi1>, vector<8x1xi32>
    %c1 = arith.constant 1 : index
    %34 = memref.load %arg3[%c1] : memref<3xf32, #tpu.memory_space<smem>>
    %35 = vector.broadcast %34 : f32 to vector<8x1xf32>
    %36 = arith.mulf %35, %16 : vector<8x1xf32>
    %c1_i32_12 = arith.constant 1 : i32
    %37 = tpu.dynamic_rotate %16 by %c1_i32_12 dim 0 : vector<8x1xf32>, i32 -> vector<8x1xf32>
    %c-1_i32 = arith.constant -1 : i32
    %38 = vector.broadcast %c-1_i32 : i32 to vector<8x1xi32>
    %39 = arith.addi %33, %38 : vector<8x1xi32>
    %c0_i32_13 = arith.constant 0 : i32
    %40 = vector.broadcast %c0_i32_13 : i32 to vector<8x1xi32>
    %41 = arith.cmpi sge, %39, %40 : vector<8x1xi32>
    %c-1_i32_14 = arith.constant -1 : i32
    %42 = vector.broadcast %c-1_i32_14 : i32 to vector<8x1xi32>
    %43 = arith.addi %33, %42 : vector<8x1xi32>
    %c4_i32_15 = arith.constant 4 : i32
    %44 = vector.broadcast %c4_i32_15 : i32 to vector<8x1xi32>
    %45 = arith.cmpi slt, %43, %44 : vector<8x1xi32>
    %46 = arith.andi %41, %45 : vector<8x1xi1>
    %c0_16 = arith.constant 0 : index
    %47 = memref.load %arg3[%c0_16] : memref<3xf32, #tpu.memory_space<smem>>
    %cst_17 = arith.constant 0.000000e+00 : f32
    %48 = vector.broadcast %cst_17 : f32 to vector<8x1xf32>
    %49 = arith.select %46, %37, %48 : vector<8x1xi1>, vector<8x1xf32>
    %50 = vector.broadcast %47 : f32 to vector<8x1xf32>
    %51 = arith.mulf %50, %49 : vector<8x1xf32>
    %52 = arith.addf %36, %51 : vector<8x1xf32>
    %c7_i32 = arith.constant 7 : i32
    %53 = tpu.dynamic_rotate %16 by %c7_i32 dim 0 : vector<8x1xf32>, i32 -> vector<8x1xf32>
    %c1_i32_18 = arith.constant 1 : i32
    %54 = vector.broadcast %c1_i32_18 : i32 to vector<8x1xi32>
    %55 = arith.addi %33, %54 : vector<8x1xi32>
    %c0_i32_19 = arith.constant 0 : i32
    %56 = vector.broadcast %c0_i32_19 : i32 to vector<8x1xi32>
    %57 = arith.cmpi sge, %55, %56 : vector<8x1xi32>
    %c1_i32_20 = arith.constant 1 : i32
    %58 = vector.broadcast %c1_i32_20 : i32 to vector<8x1xi32>
    %59 = arith.addi %33, %58 : vector<8x1xi32>
    %c4_i32_21 = arith.constant 4 : i32
    %60 = vector.broadcast %c4_i32_21 : i32 to vector<8x1xi32>
    %61 = arith.cmpi slt, %59, %60 : vector<8x1xi32>
    %62 = arith.andi %57, %61 : vector<8x1xi1>
    %c2 = arith.constant 2 : index
    %63 = memref.load %arg3[%c2] : memref<3xf32, #tpu.memory_space<smem>>
    %cst_22 = arith.constant 0.000000e+00 : f32
    %64 = vector.broadcast %cst_22 : f32 to vector<8x1xf32>
    %65 = arith.select %62, %53, %64 : vector<8x1xi1>, vector<8x1xf32>
    %66 = vector.broadcast %63 : f32 to vector<8x1xf32>
    %67 = arith.mulf %66, %65 : vector<8x1xf32>
    %68 = arith.addf %52, %67 : vector<8x1xf32>
    %c0_23 = arith.constant 0 : index
    %69 = memref.load %arg4[%c0_23] : memref<1xf32, #tpu.memory_space<smem>>
    %70 = vector.broadcast %69 : f32 to vector<8x1xf32>
    %71 = arith.addf %68, %70 : vector<8x1xf32>
    %cst_24 = arith.constant 5.000000e-01 : f32
    %72 = vector.broadcast %cst_24 : f32 to vector<8x1xf32>
    %73 = arith.mulf %72, %71 : vector<8x1xf32>
    %74 = math.tanh %73 : vector<8x1xf32>
    %cst_25 = arith.constant 5.000000e-01 : f32
    %75 = vector.broadcast %cst_25 : f32 to vector<8x1xf32>
    %76 = arith.mulf %75, %74 : vector<8x1xf32>
    %cst_26 = arith.constant 5.000000e-01 : f32
    %77 = vector.broadcast %cst_26 : f32 to vector<8x1xf32>
    %78 = arith.addf %76, %77 : vector<8x1xf32>
    %c0_27 = arith.constant 0 : index
    %c0_28 = arith.constant 0 : index
    %79 = vector.load %arg1[%c0_27, %c0_28] : memref<8x256xf32, #tpu.memory_space<vmem>>, vector<8x256xf32>
    %c0_29 = arith.constant 0 : index
    %c0_30 = arith.constant 0 : index
    %80 = vector.load %arg6[%c0_29, %c0_30] : memref<8x256xf32, #tpu.memory_space<vmem>>, vector<8x256xf32>
    %81 = arith.addf %80, %79 : vector<8x256xf32>
    %82 = vector.broadcast %78 : vector<8x1xf32> to vector<8x256xf32>
    %83 = arith.mulf %81, %82 : vector<8x256xf32>
    %84 = arith.addf %83, %80 : vector<8x256xf32>
    %c0_31 = arith.constant 0 : index
    %c0_32 = arith.constant 0 : index
    %85 = vector.load %arg5[%c0_31, %c0_32] : memref<8x256xf32, #tpu.memory_space<vmem>>, vector<8x256xf32>
    tpu.vector_store %arg5[%c0_31, %c0_32], %84 {strides = array<i32>} : memref<8x256xf32, #tpu.memory_space<vmem>>, vector<8x256xf32>,
    return
  }
  func.func @transform_0(%arg0: i32) -> (i32, i32) {
    %c0_i32 = arith.constant 0 : i32
    %c0_i32_0 = arith.constant 0 : i32
    return %arg0, %c0_i32 : i32, i32
  }
  func.func @transform_1(%arg0: i32) -> (i32, i32) {
    %c0_i32 = arith.constant 0 : i32
    %c0_i32_0 = arith.constant 0 : i32
    return %arg0, %c0_i32 : i32, i32
  }
  func.func @transform_2(%arg0: i32) -> i32 {
    %c0_i32 = arith.constant 0 : i32
    %c0_i32_0 = arith.constant 0 : i32
    return %c0_i32 : i32
  }
  func.func @transform_3(%arg0: i32) -> i32 {
    %c0_i32 = arith.constant 0 : i32
    %c0_i32_0 = arith.constant 0 : i32
    return %c0_i32 : i32
  }
  func.func @transform_4(%arg0: i32) -> (i32, i32) {
    %c0_i32 = arith.constant 0 : i32
    %c0_i32_0 = arith.constant 0 : i32
    return %arg0, %c0_i32 : i32, i32
  }
}

</mosaic_0001>

<llo_original>
// kernel: tpu_custom_call.1
$region0: #{tpu_custom_call.1}
  #allocation0 [shape = 'u32[]', space=smem, size = 0x4, offset = 0x4, fixed_abs, tag = 'smem constant byte address 0x4 - core index']
  #allocation1 [shape = 'u32[72,128]{1,0:T(1,128)}', space=vmem, size = 0x9000, scoped, tag = 'internal scratch']
  #allocation2 [shape = 'f32[8,256]{1,0:T(8,128)}', space=vmem, size = 0x2000, scoped, tag = 'scratch operand']
  #allocation3 [shape = 'f32[1]{0:T(128)S(6)}', space=smem, size = 0x200, scoped, tag = 'scoped memory for tpu_custom_call.1']
  %s0 = inlined_call_operand.hbm [shape: f32[8,256], index: 0, kind: input, shape index: {}]
  %s1 = inlined_call_operand.hbm [shape: f32[8,256], index: 1, kind: input, shape index: {}]
  %s2 = inlined_call_operand.vmem [shape: f32[3], index: 2, kind: input, shape index: {}]
  %s3 = inlined_call_operand.<no memory space> [shape: f32[1], index: 3, kind: input, shape index: {}]
  %s4 = inlined_call_operand.hbm [shape: f32[8,256], index: 4, kind: output, shape index: {}]
  %s5 = sld [smem:[#allocation0]]
  $region38: #{tpu_custom_call.1} parent=0
    _
  %s7 = ssub.s32 1, %s5
  %s8 = scalar_select 0, %s7, %s5
  %9 = sst [smem:[#allocation3]] %s3
  $region1: #{tpu_custom_call.1} parent=0
    #allocation4 [shape = 'u8[8192]{0}', space=vmem, size = 0x2000, scoped, tag = 'input window, operand 0, single buffered']
    #allocation5 [shape = 's32[1]{0}', space=sflag, size = 0x4, scoped, tag = 'scoped memory for tpu_custom_call.1']
    #allocation6 [shape = 's32[1]{0}', space=sflag, size = 0x4, scoped, tag = 'scoped memory for tpu_custom_call.1']
    #allocation7 [shape = 's32[1]{0}', space=sflag, size = 0x4, scoped, tag = 'scoped memory for tpu_custom_call.1']
    #allocation8 [shape = 'u8[8192]{0}', space=vmem, size = 0x2000, scoped, tag = 'input window, operand 1, single buffered']
    #allocation9 [shape = 's32[1]{0}', space=sflag, size = 0x4, scoped, tag = 'scoped memory for tpu_custom_call.1']
    #allocation10 [shape = 'u8[512]{0}', space=smem, size = 0x200, scoped, tag = 'input window, operand 2, single buffered']
    #allocation11 [shape = 'u8[8192]{0}', space=vmem, size = 0x2000, scoped, tag = 'output window, operand 0, single buffered']
    %10 = vsyncpa [#allocation5], 0
    %11 = vsyncpa [#allocation9], 0
    %12 = vsyncpa [#allocation7], 0
    %13 = vsyncpa [#allocation6], 0
    // Predicated region
    $region2: #{tpu_custom_call.1} parent=1 // pred_check
      _
    $region3: #{tpu_custom_call.1} parent=1 // pred_check_branch
      %15 = sbr.rel (0) target = $region5
    $region4: #{tpu_custom_call.1} parent=1 // pred_region
      %17 = vsyncadd [#allocation5], 0
      %s19 = sshll.u32 %s0, 4
      %s20 = int_to_ptr.hbm [resolvable:$true] %s19
      %s21 = sshll.u32 [#allocation4], 4
      %s22 = int_to_ptr.vmem [resolvable:$true] %s21
      %24 = dma.hbm_to_vmem [thread:$0]  %s20, 256, %s22, [#allocation5]
    $region5: #{tpu_custom_call.1} parent=1 // pred_fallthru
      _
    // Predicated region
    $region6: #{tpu_custom_call.1} parent=1 // pred_check
      _
    $region7: #{tpu_custom_call.1} parent=1 // pred_check_branch
      %26 = sbr.rel (0) target = $region9
    $region8: #{tpu_custom_call.1} parent=1 // pred_region
      %28 = vsyncadd [#allocation9], 0
      %s30 = sshll.u32 %s1, 4
      %s31 = int_to_ptr.hbm [resolvable:$true] %s30
      %s32 = sshll.u32 [#allocation8], 4
      %s33 = int_to_ptr.vmem [resolvable:$true] %s32
      %35 = dma.hbm_to_vmem [thread:$0]  %s31, 256, %s33, [#allocation9]
    $region9: #{tpu_custom_call.1} parent=1 // pred_fallthru
      _
    // Predicated region
    $region10: #{tpu_custom_call.1} parent=1 // pred_check
      _
    $region11: #{tpu_custom_call.1} parent=1 // pred_check_branch
      %37 = sbr.rel (0) target = $region13
    $region12: #{tpu_custom_call.1} parent=1 // pred_region
      %39 = vsyncadd [#allocation7], 0
      %s41 = sshll.u32 %s2, 4
      %s42 = int_to_ptr.vmem [resolvable:$true] %s41
      %44 = dma.vmem_to_smem %s42, 16, [#allocation10], [#allocation7]
    $region13: #{tpu_custom_call.1} parent=1 // pred_fallthru
      _
    // Predicated region
    $region14: #{tpu_custom_call.1} parent=1 // pred_check
      _
    $region15: #{tpu_custom_call.1} parent=1 // pred_check_branch
      %46 = sbr.rel (0) target = $region17
    $region16: #{tpu_custom_call.1} parent=1 // pred_region
      _
    $region17: #{tpu_custom_call.1} parent=1 // pred_fallthru
      _
    // Predicated region
    $region18: #{tpu_custom_call.1} parent=1 // pred_check
      _
    $region19: #{tpu_custom_call.1} parent=1 // pred_check_branch
      %48 = sbr.rel (0) target = $region21
    $region20: #{tpu_custom_call.1} parent=1 // pred_region
      %50 = dma.done [#allocation5], 256
    $region21: #{tpu_custom_call.1} parent=1 // pred_fallthru
      _
    // Predicated region
    $region22: #{tpu_custom_call.1} parent=1 // pred_check
      _
    $region23: #{tpu_custom_call.1} parent=1 // pred_check_branch
      %52 = sbr.rel (0) target = $region25
    $region24: #{tpu_custom_call.1} parent=1 // pred_region
      %54 = dma.done [#allocation9], 256
    $region25: #{tpu_custom_call.1} parent=1 // pred_fallthru
      _
    // Predicated region
    $region26: #{tpu_custom_call.1} parent=1 // pred_check
      _
    $region27: #{tpu_custom_call.1} parent=1 // pred_check_branch
      %56 = sbr.rel (0) target = $region29
    $region28: #{tpu_custom_call.1} parent=1 // pred_region
      %58 = dma.done [#allocation7], 16
    $region29: #{tpu_custom_call.1} parent=1 // pred_fallthru
      _
    %59 = sfence
    %v60 = vld [vmem:[#allocation4] sm:$0xff]
    %v61 = vld [vmem:[#allocation4 + $0x8] sm:$0xff]
    %v62 = vld [vmem:[#allocation8] sm:$0xff]
    %v63 = vld [vmem:[#allocation8 + $0x8] sm:$0xff]
    %v64 = vmul.f32 %v62, %v60
    %v65 = vmul.f32 %v63, %v61
    %v66 = vadd.f32 %v64, %v62
    %v67 = vadd.f32 %v65, %v63
    %v68 = vmul.f32 %v66, 0.5
    %v69 = vmul.f32 %v67, 0.5
    %v70 = vtanh.pop %v68
    %v71 = vtanh.pop %v69
    %v72 = vmul.f32 %v70, 0.5
    %v73 = vmul.f32 %v71, 0.5
    %v74 = vadd.f32 %v72, 0.5
    %v75 = vadd.f32 %v73, 0.5
    %76 = vst [vmem:[#allocation2] sm:$0xff] %v74
    %77 = vst [vmem:[#allocation2 + $0x8] sm:$0xff] %v75
    %v78 = vadd.f32 %v74, %v60
    %v79 = vadd.f32 %v75, %v61
    %v80 = vadd.f32 %v78, %v79
    %81 = vadd.xlane.f32.xlu0 %v80
    %v82 = vpop.xlane.xlu0 %81
    %v83 = vmul.f32 %v82, 0.00390625
    %v84 = vlaneseq
    %v85 = vshrl.u32 %v84, 7
    %vm86 = vcmp.lt.s32.totalorder %v85, 0
    %v87 = vsub.s32 0, %v85
    %v88 = vsel %vm86, %v87, %v85
    %v89 = vshrl.u32 %v88, 2
    %v90 = vand.u32 %v88, 3
    %v91 = vsub.s32 0, %v90
    %v92 = vsel %vm86, %v91, %v90
    %vm93 = vcmp.ne.s32.totalorder %v92, 0
    %vm94 = vcmp.lt.s32.totalorder %v92, 0
    %vm95 = vmand %vm94, %vm93
    %v96 = vadd.s32 %v92, 4
    %v97 = vsel %vm95, %v96, %v92
    %s98 = sld [smem:[#allocation10 + $0x1]]
    %v99 = vstv %s98
    %v100 = vmul.f32 %v99, %v83
    %v101 = vrot.slane %v83, 7
    %v102 = vadd.s32 %v97, 4294967295
    %vm103 = vcmp.ge.s32.totalorder %v102, 0
    %vm104 = vcmp.lt.s32.totalorder %v102, 4
    %vm105 = vmand %vm103, %vm104
    %s106 = sld [smem:[#allocation10]]
    %v107 = vsel %vm105, %v101, 0.0
    %v108 = vstv %s106
    %v109 = vmul.f32 %v108, %v107
    %v110 = vadd.f32 %v100, %v109
    %v111 = vrot.slane %v83, 1
    %v112 = vadd.s32 %v97, 1
    %vm113 = vcmp.ge.s32.totalorder %v112, 0
    %vm114 = vcmp.lt.s32.totalorder %v112, 4
    %vm115 = vmand %vm113, %vm114
    %s116 = sld [smem:[#allocation10 + $0x2]]
    %v117 = vsel %vm115, %v111, 0.0
    %v118 = vstv %s116
    %v119 = vmul.f32 %v118, %v117
    %v120 = vadd.f32 %v110, %v119
    %s121 = sld [smem:[#allocation3]]
    %v122 = vstv %s121
    %v123 = vadd.f32 %v120, %v122
    %v124 = vmul.f32 %v123, 0.5
    %v125 = vtanh.pop %v124
    %v126 = vmul.f32 %v125, 0.5
    %v127 = vadd.f32 %v126, 0.5
    %v128 = vld [vmem:[#allocation4] sm:$0xff]
    %v129 = vld [vmem:[#allocation4 + $0x8] sm:$0xff]
    %v130 = vld [vmem:[#allocation2] sm:$0xff]
    %v131 = vld [vmem:[#allocation2 + $0x8] sm:$0xff]
    %v132 = vadd.f32 %v130, %v128
    %v133 = vadd.f32 %v131, %v129
    %135 = vset.pattern.permute.xlu0 0
    %136 = vperm.xlu0 %135, %v127
    %v137 = vpop.permute.xlu0 %136
    %v139 = vmul.f32 %v132, %v137
    %v140 = vmul.f32 %v133, %v137
    %v141 = vadd.f32 %v139, %v130
    %v142 = vadd.f32 %v140, %v131
    %143 = vst [vmem:[#allocation11] sm:$0xff] %v141
    %144 = vst [vmem:[#allocation11 + $0x8] sm:$0xff] %v142
    // Predicated region
    $region30: #{tpu_custom_call.1} parent=1 // pred_check
      _
    $region31: #{tpu_custom_call.1} parent=1 // pred_check_branch
      %146 = sbr.rel (0) target = $region33
    $region32: #{tpu_custom_call.1} parent=1 // pred_region
      %148 = vsyncadd [#allocation6], 0
      %s150 = sshll.u32 [#allocation11], 4
      %s151 = int_to_ptr.vmem [resolvable:$true] %s150
      %s152 = sshll.u32 %s4, 4
      %s153 = int_to_ptr.hbm [resolvable:$true] %s152
      %155 = dma.vmem_to_hbm [thread:$0]  %s151, 256, %s153, [#allocation6]
    $region33: #{tpu_custom_call.1} parent=1 // pred_fallthru
      _
    // Predicated region
    $region34: #{tpu_custom_call.1} parent=1 // pred_check
      _
    $region35: #{tpu_custom_call.1} parent=1 // pred_check_branch
      %157 = sbr.rel (0) target = $region37
    $region36: #{tpu_custom_call.1} parent=1 // pred_region
      %159 = dma.done [#allocation6], 256
    $region37: #{tpu_custom_call.1} parent=1 // pred_fallthru
      _
    %160 = vsyncpa [#allocation5], 1
    %161 = vsyncpa [#allocation9], 1
    %162 = vsyncpa [#allocation6], 1
    %163 = vsyncpa [#allocation7], 1

</llo_original>
